<compile_context>
chip_gen: v7x
topology: tpu7x:2x2x1
jax: 0.10.0
libtpu: 0.0.40
codegen_flags: <defaults>
</compile_context>

<pallas_src>
import jax
import jax.numpy as jnp
from jax.experimental import pallas as pl
from jax.experimental.pallas import tpu as pltpu


_TILE_PAIRS = 128          # pairs per grid step (lane-dense: multiple of 128)
_PALLAS_MIN_BATCH = 256    # below this, the fused XLA path wins over any launch


def _pair_distance_kernel(p1_ref, p2_ref, out_ref):
    # p1_ref  : VMEM f32[D, TB]   gathered node_positions[idx[:, 0]] (transposed)
    # p2_ref  : VMEM f32[D, TB]   gathered node_positions[idx[:, 1]] (transposed)
    # out_ref : VMEM f32[1, TB]   distances for this tile of pairs
    d = p1_ref[...] - p2_ref[...]                       # (D, TB)
    sq = jnp.sum(d * d, axis=0, keepdims=True)          # sublane reduce -> (1, TB)
    out_ref[...] = jnp.sqrt(sq)


def _jnp_pair_distances(node_positions, pair_indices):
    """Fused XLA gather + reduce, used for small batches / single pairs."""
    p1 = jnp.take(node_positions, pair_indices[:, 0], axis=0)
    p2 = jnp.take(node_positions, pair_indices[:, 1], axis=0)
    return jnp.sqrt(jnp.sum((p1 - p2) ** 2, axis=-1))


def pairwise_node_distances(node_positions, pair_indices, *, force_pallas=False):
    """Euclidean distances for a batch of node-index pairs.

    node_positions : (N, D) float array (the torch Parameter)
    pair_indices   : (B, 2) integer array of (node_1_index, node_2_index)
    returns        : (B,) float32 distances
    """
    node_positions = jnp.asarray(node_positions, jnp.float32)
    n, d = node_positions.shape
    pair_indices = jnp.asarray(pair_indices, jnp.int32).reshape(-1, 2)
    # No runtime bounds check on gathers; clamp so an out-of-range index cannot
    # silently read adjacent memory. (torch would raise an IndexError instead.)
    pair_indices = jnp.clip(pair_indices, 0, n - 1)
    b = pair_indices.shape[0]

    if b < _PALLAS_MIN_BATCH and not force_pallas:
        # Launch overhead of a pallas_call exceeds the whole op at this size.
        return _jnp_pair_distances(node_positions, pair_indices)

    tb = _TILE_PAIRS
    b_pad = pl.cdiv(b, tb) * tb

    # Wrapper-side gather (one fused XLA gather per operand), then transpose so
    # pairs sit on the lane axis and D on the sublane axis. Padded tail pairs
    # are zero rows -> distance 0, sliced off below.
    p1 = jnp.take(node_positions, pair_indices[:, 0], axis=0)   # (B, D)
    p2 = jnp.take(node_positions, pair_indices[:, 1], axis=0)   # (B, D)
    p1t = jnp.zeros((d, b_pad), jnp.float32).at[:, :b].set(p1.T)
    p2t = jnp.zeros((d, b_pad), jnp.float32).at[:, :b].set(p2.T)

    out = pl.pallas_call(
        _pair_distance_kernel,
        out_shape=jax.ShapeDtypeStruct((1, b_pad), jnp.float32),
        grid=(b_pad // tb,),
        in_specs=[
            # (D, TB) blocks: sublane dim == full array dim D, lane dim = 128k.
            pl.BlockSpec((d, tb), lambda i: (0, i)),
            pl.BlockSpec((d, tb), lambda i: (0, i)),
        ],
        # Lane-dense output block -> unmasked vector stores.
        out_specs=pl.BlockSpec((1, tb), lambda i: (0, i)),
        compiler_params=pltpu.CompilerParams(
            # Tiles are independent; lets v7x's 2 TensorCores split the batch.
            dimension_semantics=("parallel",),
        ),
    )(p1t, p2t)
    return out[0, :b]


def xy_mapping_forward(node_positions, node_1_index, node_2_index):
    """Pallas-module equivalent of xy_mapping.forward(node_1_index, node_2_index).

    Single pair -> fused XLA path (a pallas_call launch would be pure overhead);
    batches go through pairwise_node_distances which dispatches to the kernel.
    """
    pair = jnp.stack(
        [jnp.asarray(node_1_index, jnp.int32), jnp.asarray(node_2_index, jnp.int32)]
    ).reshape(1, 2)
    return pairwise_node_distances(node_positions, pair)[0]   # 0-d scalar, like torch


if __name__ == "__main__":
    # Deterministic synthetic "graph": N nodes with D=2 (x, y) positions
    # (stand-in for GG.nodes[...]['position']; no checkpoint / file load).
    N, D = 16, 2
    key = jax.random.PRNGKey(0)
    kpos, kidx = jax.random.split(key)
    node_positions = jax.random.normal(kpos, (N, D), dtype=jnp.float32) * 10.0

    # --- single pair: the module's forward() semantics (XLA fast path) ---
    node_1_index, node_2_index = 3, 11
    dist = jax.block_until_ready(
        xy_mapping_forward(node_positions, node_1_index, node_2_index)
    )
    ref = jnp.sqrt(
        jnp.sum((node_positions[node_1_index] - node_positions[node_2_index]) ** 2)
    )
    assert jnp.allclose(dist, ref, rtol=1e-5, atol=1e-5), (dist, ref)

    # --- batched pairs through the Pallas kernel (tiled, lane-dense) ---
    B = 300  # > _PALLAS_MIN_BATCH -> Pallas path; non-multiple of 128 tests padding
    pairs = jax.random.randint(kidx, (B, 2), 0, N, dtype=jnp.int32)
    dists = jax.block_until_ready(pairwise_node_distances(node_positions, pairs))
    refs = jnp.sqrt(
        jnp.sum(
            (node_positions[pairs[:, 0]] - node_positions[pairs[:, 1]]) ** 2, axis=-1
        )
    )
    assert dists.shape == (B,)
    assert jnp.allclose(dists, refs, rtol=1e-5, atol=1e-5), (dists, refs)

    # --- small batch forced through the kernel: both paths must agree ---
    small = jnp.array([[3, 11], [0, 1], [5, 5], [2, 15]], dtype=jnp.int32)
    d_pallas = jax.block_until_ready(
        pairwise_node_distances(node_positions, small, force_pallas=True)
    )
    d_jnp = _jnp_pair_distances(node_positions, small)
    assert jnp.allclose(d_pallas, d_jnp, rtol=1e-5, atol=1e-5), (d_pallas, d_jnp)

    # TODO(synk): xy_mapping.__init__ name<->index dict building and move() only
    # mutate the Python networkx graph object (pure bookkeeping) — no Pallas
    # equivalent.
    print("KERNEL_OK")
</pallas_src>

<mosaic_0001>
module attributes {stable_mosaic.version = 11 : i64} {
  func.func @_pair_distance_kernel(%arg0: i32, %arg1: memref<2x128xf32, #tpu.memory_space<vmem>>, %arg2: memref<2x128xf32, #tpu.memory_space<vmem>>, %arg3: memref<1x128xf32, #tpu.memory_space<vmem>>) attributes {dimension_semantics = [#tpu.dimension_semantics<parallel>], iteration_bounds = array<i64: 3>, scalar_prefetch = 0 : i64, scratch_operands = 0 : i64, tpu.core_type = #tpu.core_type<tc>, window_params = [{transform_indices = @transform_0, window_bounds = array<i64: 2, 128>}, {transform_indices = @transform_1, window_bounds = array<i64: 2, 128>}, {transform_indices = @transform_2, window_bounds = array<i64: 1, 128>}]} {
    %c0 = arith.constant 0 : index
    %c0_0 = arith.constant 0 : index
    %0 = vector.load %arg1[%c0, %c0_0] : memref<2x128xf32, #tpu.memory_space<vmem>>, vector<2x128xf32>
    %c0_1 = arith.constant 0 : index
    %c0_2 = arith.constant 0 : index
    %1 = vector.load %arg2[%c0_1, %c0_2] : memref<2x128xf32, #tpu.memory_space<vmem>>, vector<2x128xf32>
    %2 = arith.subf %0, %1 : vector<2x128xf32>
    %3 = arith.mulf %2, %2 : vector<2x128xf32>
    %cst = arith.constant dense<0.000000e+00> : vector<128xf32>
    %4 = vector.multi_reduction <add>, %3, %cst [0] : vector<2x128xf32> to vector<128xf32>
    %5 = vector.shape_cast %4 : vector<128xf32> to vector<1x128xf32>
    %6 = math.sqrt %5 : vector<1x128xf32>
    %c0_3 = arith.constant 0 : index
    %c0_4 = arith.constant 0 : index
    %7 = vector.load %arg3[%c0_3, %c0_4] : memref<1x128xf32, #tpu.memory_space<vmem>>, vector<1x128xf32>
    tpu.vector_store %arg3[%c0_3, %c0_4], %6 {strides = array<i32>} : memref<1x128xf32, #tpu.memory_space<vmem>>, vector<1x128xf32>,
    return
  }
  func.func @transform_0(%arg0: i32) -> (i32, i32) {
    %c0_i32 = arith.constant 0 : i32
    %c0_i32_0 = arith.constant 0 : i32
    return %c0_i32, %arg0 : i32, i32
  }
  func.func @transform_1(%arg0: i32) -> (i32, i32) {
    %c0_i32 = arith.constant 0 : i32
    %c0_i32_0 = arith.constant 0 : i32
    return %c0_i32, %arg0 : i32, i32
  }
  func.func @transform_2(%arg0: i32) -> (i32, i32) {
    %c0_i32 = arith.constant 0 : i32
    %c0_i32_0 = arith.constant 0 : i32
    return %c0_i32, %arg0 : i32, i32
  }
}

</mosaic_0001>

<llo_original>
// kernel: tpu_custom_call.1
$region0: #{tpu_custom_call.1}
  #allocation0 [shape = 'u32[]', space=smem, size = 0x4, offset = 0x4, fixed_abs, tag = 'smem constant byte address 0x4 - core index']
  #allocation1 [shape = 'u32[144,128]{1,0:T(1,128)}', space=vmem, size = 0x12000, scoped, tag = 'internal scratch']
  %s0 = inlined_call_operand.hbm [shape: f32[2,384], index: 0, kind: input, shape index: {}]
  %s1 = inlined_call_operand.hbm [shape: f32[2,384], index: 1, kind: input, shape index: {}]
  %s2 = inlined_call_operand.hbm [shape: f32[1,384], index: 2, kind: output, shape index: {}]
  %s3 = sld [smem:[#allocation0]]
  $region49: #{tpu_custom_call.1} parent=0
    _
  %s5 = ssub.s32 1, %s3
  %s6 = scalar_select 0, %s5, %s3
  $region1: #{tpu_custom_call.1} parent=0
    #allocation2 [shape = 'u8[2048]{0}', space=vmem, size = 0x800, scoped, tag = 'input window, operand 0']
    #allocation3 [shape = 's32[2]{0}', space=sflag, size = 0x8, scoped, tag = 'scoped memory for tpu_custom_call.1']
    #allocation4 [shape = 's32[2]{0}', space=sflag, size = 0x8, scoped, tag = 'scoped memory for tpu_custom_call.1']
    #allocation5 [shape = 'u8[2048]{0}', space=vmem, size = 0x800, scoped, tag = 'input window, operand 1']
    #allocation6 [shape = 's32[2]{0}', space=sflag, size = 0x8, scoped, tag = 'scoped memory for tpu_custom_call.1']
    #allocation7 [shape = 'u8[1024]{0}', space=vmem, size = 0x400, scoped, tag = 'output window, operand 0']
    %7 = vsyncpa [#allocation3], 0
    %s8 = scalar_lea.sflag [#allocation3], 1
    %9 = vsyncpa %s8, 0
    %10 = vsyncpa [#allocation6], 0
    %s11 = scalar_lea.sflag [#allocation6], 1
    %12 = vsyncpa %s11, 0
    %13 = vsyncpa [#allocation4], 0
    %s14 = scalar_lea.sflag [#allocation4], 1
    %15 = vsyncpa %s14, 0
    loop: start=0, step=1, limit=5
    $region2: #{tpu_custom_call.1} parent=1 // loop_pre_header
      _
    $region3: #{tpu_custom_call.1} parent=1 // loop_header
      %s17 = sphi 0, %s21
      %p18 = scmp.ge.s32.totalorder %s17, 5
      %s27 = sphi 0, %s29
      %s30 = sphi 0, %s27
      %s31 = sphi 0, %s30
      %s47 = sphi 0, %s31
      %s53 = sphi 0, %s55
      %s56 = sphi 0, %s53
      %s57 = sphi 0, %s56
      %s73 = sphi 0, %s57
      %s79 = sphi 0, %s81
      %s82 = sphi 0, %s79
      %s83 = sphi 0, %s82
      %s99 = sphi 0, %s83
    $region4: #{tpu_custom_call.1} parent=1 // loop_header_branch
      %20 = sbr.rel (%p18) target = $region8
    $region5: #{tpu_custom_call.1} parent=1 // loop_body
      %s22 = ssub.s32 %s17, 1
      %s23 = ssub.s32 %s17, 2
      %s24 = sadd.s32 %s17, 1
      %s25 = ssub.s32 %s17, %s24
      %p26 = scmp.eq.s32.totalorder %s25, 0
      %s28 = sadd.s32 %s27, 1
      %s29 = scalar_select %p26, %s27, %s28
      %p32 = pneg %p26
      %p33 = scmp.eq.s32.totalorder %s17, 2
      %p34 = por %p32, %p33
      %p35 = scmp.ne.s32.totalorder %s27, %s30
      %p36 = scmp.eq.s32.totalorder %s17, 0
      %p37 = por %p35, %p36
      %p38 = scmp.ne.s32.totalorder %s27, %s30
      %p39 = scmp.eq.s32.totalorder %s22, 2
      %p40 = por %p38, %p39
      %p41 = scmp.ne.s32.totalorder %s30, %s31
      %p42 = scmp.eq.s32.totalorder %s22, 0
      %p43 = por %p41, %p42
      %p44 = scmp.ne.s32.totalorder %s30, %s31
      %p45 = scmp.eq.s32.totalorder %s23, 2
      %p46 = por %p44, %p45
      %p48 = scmp.ne.s32.totalorder %s31, %s47
      %p49 = scmp.eq.s32.totalorder %s23, 0
      %p50 = por %p48, %p49
      %s51 = ssub.s32 %s17, %s24
      %p52 = scmp.eq.s32.totalorder %s51, 0
      %s54 = sadd.s32 %s53, 1
      %s55 = scalar_select %p52, %s53, %s54
      %p58 = pneg %p52
      %p59 = scmp.eq.s32.totalorder %s17, 2
      %p60 = por %p58, %p59
      %p61 = scmp.ne.s32.totalorder %s53, %s56
      %p62 = scmp.eq.s32.totalorder %s17, 0
      %p63 = por %p61, %p62
      %p64 = scmp.ne.s32.totalorder %s53, %s56
      %p65 = scmp.eq.s32.totalorder %s22, 2
      %p66 = por %p64, %p65
      %p67 = scmp.ne.s32.totalorder %s56, %s57
      %p68 = scmp.eq.s32.totalorder %s22, 0
      %p69 = por %p67, %p68
      %p70 = scmp.ne.s32.totalorder %s56, %s57
      %p71 = scmp.eq.s32.totalorder %s23, 2
      %p72 = por %p70, %p71
      %p74 = scmp.ne.s32.totalorder %s57, %s73
      %p75 = scmp.eq.s32.totalorder %s23, 0
      %p76 = por %p74, %p75
      %s77 = ssub.s32 %s17, %s24
      %p78 = scmp.eq.s32.totalorder %s77, 0
      %s80 = sadd.s32 %s79, 1
      %s81 = scalar_select %p78, %s79, %s80
      %p84 = pneg %p78
      %p85 = scmp.eq.s32.totalorder %s17, 2
      %p86 = por %p84, %p85
      %p87 = scmp.ne.s32.totalorder %s79, %s82
      %p88 = scmp.eq.s32.totalorder %s17, 0
      %p89 = por %p87, %p88
      %p90 = scmp.ne.s32.totalorder %s79, %s82
      %p91 = scmp.eq.s32.totalorder %s22, 2
      %p92 = por %p90, %p91
      %p93 = scmp.ne.s32.totalorder %s82, %s83
      %p94 = scmp.eq.s32.totalorder %s22, 0
      %p95 = por %p93, %p94
      %p96 = scmp.ne.s32.totalorder %s82, %s83
      %p97 = scmp.eq.s32.totalorder %s23, 2
      %p98 = por %p96, %p97
      %p100 = scmp.ne.s32.totalorder %s83, %s99
      %p101 = scmp.eq.s32.totalorder %s23, 0
      %p102 = por %p100, %p101
      %p103 = scmp.le.s32.totalorder 1, %s17
      %p104 = scmp.lt.s32.totalorder %s17, 4
      %p105 = pnand %p103, %p104
      %p106 = pneg %p105
      // Predicated region
      $region9: #{tpu_custom_call.1} parent=5 // pred_check
        _
      $region10: #{tpu_custom_call.1} parent=5 // pred_check_branch
        %108 = sbr.rel (%p105) target = $region12
      $region11: #{tpu_custom_call.1} parent=5 // pred_region
        %s109 = ssub.s32 %s17, 1
      $region12: #{tpu_custom_call.1} parent=5 // pred_fallthru
        _
      %p110 = scmp.lt.s32.totalorder %s17, 3
      // Predicated region
      $region13: #{tpu_custom_call.1} parent=5 // pred_check
        %p111 = pneg %p110
      $region14: #{tpu_custom_call.1} parent=5 // pred_check_branch
        %113 = sbr.rel (%p111) target = $region16
      $region15: #{tpu_custom_call.1} parent=5 // pred_region
        // Predicated region
        $region17: #{tpu_custom_call.1} parent=15 // pred_check
          %p114 = pneg %p37
        $region18: #{tpu_custom_call.1} parent=15 // pred_check_branch
          %116 = sbr.rel (%p114) target = $region20
        $region19: #{tpu_custom_call.1} parent=15 // pred_region
          %s117 = sand.u32 %s27, 1
          %s118 = scalar_lea.sflag [#allocation3], %s117
          %s119 = sand.u32 %s27, 1
          %s120 = smul.addr %s119, 2
          %s121 = scalar_lea.vmem [#allocation2], %s120
          %s123 = ssub.s32 32, 32
          %124 = vsyncadd %s118, %s123
          %s125 = smul.addr %s17, 32
          %s126 = scalar_lea.hbm %s0, %s125
          %s128 = sshll.u32 %s121, 4
          %s129 = int_to_ptr.vmem [resolvable:$true] %s128
          %131 = dma.hbm_to_vmem [thread:$0]  %s126, 32, %s129, %s118
        $region20: #{tpu_custom_call.1} parent=15 // pred_fallthru
          _
        // Predicated region
        $region21: #{tpu_custom_call.1} parent=15 // pred_check
          %p132 = pneg %p63
        $region22: #{tpu_custom_call.1} parent=15 // pred_check_branch
          %134 = sbr.rel (%p132) target = $region24
        $region23: #{tpu_custom_call.1} parent=15 // pred_region
          %s135 = sand.u32 %s53, 1
          %s136 = scalar_lea.sflag [#allocation6], %s135
          %s137 = sand.u32 %s53, 1
          %s138 = smul.addr %s137, 2
          %s139 = scalar_lea.vmem [#allocation5], %s138
          %s141 = ssub.s32 32, 32
          %142 = vsyncadd %s136, %s141
          %s143 = smul.addr %s17, 32
          %s144 = scalar_lea.hbm %s1, %s143
          %s146 = sshll.u32 %s139, 4
          %s147 = int_to_ptr.vmem [resolvable:$true] %s146
          %149 = dma.hbm_to_vmem [thread:$0]  %s144, 32, %s147, %s136
        $region24: #{tpu_custom_call.1} parent=15 // pred_fallthru
          _
      $region16: #{tpu_custom_call.1} parent=5 // pred_fallthru
        _
      %p150 = scmp.le.s32.totalorder 1, %s17
      %p151 = scmp.lt.s32.totalorder %s17, 4
      %p152 = pnand %p150, %p151
      %p153 = pneg %p152
      // Predicated region
      $region25: #{tpu_custom_call.1} parent=5 // pred_check
        _
      $region26: #{tpu_custom_call.1} parent=5 // pred_check_branch
        %155 = sbr.rel (%p152) target = $region28
      $region27: #{tpu_custom_call.1} parent=5 // pred_region
        %s156 = ssub.s32 %s17, 1
        %s157 = sand.u32 %s30, 1
        %s158 = scalar_lea.sflag [#allocation3], %s157
        %s159 = sand.u32 %s30, 1
        %s160 = smul.addr %s159, 2
        %s161 = scalar_lea.vmem [#allocation2], %s160
        // Predicated region
        $region29: #{tpu_custom_call.1} parent=27 // pred_check
          %p162 = pneg %p43
        $region30: #{tpu_custom_call.1} parent=27 // pred_check_branch
          %164 = sbr.rel (%p162) target = $region32
        $region31: #{tpu_custom_call.1} parent=27 // pred_region
          %165 = dma.done %s158, 32
        $region32: #{tpu_custom_call.1} parent=27 // pred_fallthru
          _
        %s166 = sand.u32 %s56, 1
        %s167 = scalar_lea.sflag [#allocation6], %s166
        %s168 = sand.u32 %s56, 1
        %s169 = smul.addr %s168, 2
        %s170 = scalar_lea.vmem [#allocation5], %s169
        // Predicated region
        $region33: #{tpu_custom_call.1} parent=27 // pred_check
          %p171 = pneg %p69
        $region34: #{tpu_custom_call.1} parent=27 // pred_check_branch
          %173 = sbr.rel (%p171) target = $region36
        $region35: #{tpu_custom_call.1} parent=27 // pred_region
          %174 = dma.done %s167, 32
        $region36: #{tpu_custom_call.1} parent=27 // pred_fallthru
          _
        %s175 = sand.u32 %s30, 1
        %s176 = scalar_lea.sflag [#allocation3], %s175
        %s177 = sand.u32 %s30, 1
        %s178 = smul.addr %s177, 2
        %s179 = scalar_lea.vmem [#allocation2], %s178
        %p180 = pneg %p43
        %p181 = pneg %p40
        %s182 = sand.u32 %s56, 1
        %s183 = scalar_lea.sflag [#allocation6], %s182
        %s184 = sand.u32 %s56, 1
        %s185 = smul.addr %s184, 2
        %s186 = scalar_lea.vmem [#allocation5], %s185
        %p187 = pneg %p69
        %p188 = pneg %p66
        %p189 = pneg %p95
        %p190 = pneg %p92
        %s191 = sand.u32 %s82, 1
        %s192 = scalar_lea.sflag [#allocation4], %s191
        %s193 = sand.u32 %s82, 1
        %s194 = scalar_lea.vmem [#allocation7], %s193
        %v195 = vld [vmem:[%s161] sm:$0x3]
        %v196 = vld [vmem:[%s170] sm:$0x3]
        %v197 = vsub.f32 %v195, %v196
        %v198 = vmul.f32 %v197, %v197
        %vm199 = vcmask 1041408
        %v200 = vsel %vm199, %v198, 0.0
        %v201 = vrot.slane %v200, 4
        %v202 = vadd.f32 %v200, %v201
        %v203 = vrot.slane %v202, 2
        %v204 = vadd.f32 %v202, %v203
        %v205 = vrot.slane %v204, 1
        %v206 = vadd.f32 %v204, %v205
        %v207 = vrsqrt.pop %v206
        %v208 = vmul.f32 %v206, %v207
        %vm209 = vcmp.eq.f32.partialorder %v206, inf
        %v210 = vsel %vm209, %v206, %v208
        %vm211 = vcmp.eq.f32.partialorder %v206, 0.0
        %v212 = vand.u32 %v206, 2147483648
        %v213 = vsel %vm211, %v212, %v210
        %214 = vst [vmem:[%s194] sm:$0x1] %v213
        %s215 = sand.u32 %s82, 1
        %s216 = scalar_lea.sflag [#allocation4], %s215
        %s217 = sand.u32 %s82, 1
        %s218 = scalar_lea.vmem [#allocation7], %s217
        // Predicated region
        $region37: #{tpu_custom_call.1} parent=27 // pred_check
          %p219 = pneg %p92
        $region38: #{tpu_custom_call.1} parent=27 // pred_check_branch
          %221 = sbr.rel (%p219) target = $region40
        $region39: #{tpu_custom_call.1} parent=27 // pred_region
          %s223 = ssub.s32 16, 16
          %224 = vsyncadd %s216, %s223
          %s225 = smul.addr %s22, 16
          %s226 = scalar_lea.hbm %s2, %s225
          %s228 = sshll.u32 %s218, 4
          %s229 = int_to_ptr.vmem [resolvable:$true] %s228
          %231 = dma.vmem_to_hbm [thread:$0]  %s229, 16, %s226, %s216
        $region40: #{tpu_custom_call.1} parent=27 // pred_fallthru
          _
      $region28: #{tpu_custom_call.1} parent=5 // pred_fallthru
        _
      %p232 = scmp.le.s32.totalorder 2, %s17
      // Predicated region
      $region41: #{tpu_custom_call.1} parent=5 // pred_check
        %p233 = pneg %p232
      $region42: #{tpu_custom_call.1} parent=5 // pred_check_branch
        %235 = sbr.rel (%p233) target = $region44
      $region43: #{tpu_custom_call.1} parent=5 // pred_region
        %s236 = ssub.s32 %s17, 2
        // Predicated region
        $region45: #{tpu_custom_call.1} parent=43 // pred_check
          %p237 = pneg %p98
        $region46: #{tpu_custom_call.1} parent=43 // pred_check_branch
          %239 = sbr.rel (%p237) target = $region48
        $region47: #{tpu_custom_call.1} parent=43 // pred_region
          %s240 = sand.u32 %s83, 1
          %s241 = scalar_lea.sflag [#allocation4], %s240
          %s242 = sand.u32 %s83, 1
          %s243 = scalar_lea.vmem [#allocation7], %s242
          %244 = dma.done %s241, 16
        $region48: #{tpu_custom_call.1} parent=43 // pred_fallthru
          _
      $region44: #{tpu_custom_call.1} parent=5 // pred_fallthru
        _
    $region6: #{tpu_custom_call.1} parent=1 // loop_footer
      %s21 = sadd.s32 1, %s17
    $region7: #{tpu_custom_call.1} parent=1 // loop_footer_branch
      %16 = sbr.rel target = $region3
    $region8: #{tpu_custom_call.1} parent=1 // loop_exit
      _
    %245 = vsyncpa [#allocation3], 1
    %s246 = scalar_lea.sflag [#allocation3], 1
    %247 = vsyncpa %s246, 1
    %248 = vsyncpa [#allocation6], 1
    %s249 = scalar_lea.sflag [#allocation6], 1
    %250 = vsyncpa %s249, 1
    %251 = vsyncpa [#allocation4], 1
    %s252 = scalar_lea.sflag [#allocation4], 1
    %253 = vsyncpa %s252, 1

</llo_original>
